<compile_context>
chip_gen: v6e
topology: v6e:2x2x1
jax: 0.10.0
libtpu: 0.0.40
codegen_flags: <defaults>
</compile_context>

<pallas_src>
import functools

import jax
import jax.numpy as jnp
from jax import lax
from jax.experimental import pallas as pl
from jax.experimental.pallas import tpu as pltpu


def _round_up(v, m):
    return (v + m - 1) // m * m


def _clustering_kernel(x_ref, w_ref, w2_ref, o_ref, *, alpha, use_bf16_matmul):
    """One batch tile of the DCEC soft assignment.

    x_ref : (TN, D) f32  embeddings tile
    w_ref : (K, D)  f32  cluster centers (grid-invariant, VMEM resident)
    w2_ref: (1, K)  f32  precomputed ||w_j||^2
    o_ref : (TN, K) f32  row-normalized Student-t assignments
    """
    x = x_ref[...]
    w = w_ref[...]
    w2 = w2_ref[...]

    # Cross term x @ w.T on the MXU (contract the feature axis of both).
    if use_bf16_matmul:
        xw = lax.dot_general(
            x.astype(jnp.bfloat16), w.astype(jnp.bfloat16),
            (((1,), (1,)), ((), ())),
            preferred_element_type=jnp.float32)
    else:
        xw = lax.dot_general(
            x, w, (((1,), (1,)), ((), ())),
            preferred_element_type=jnp.float32)            # (TN, K)

    # ||x_i||^2: cheap per-row reduction; in-kernel avoids an extra HBM pass.
    x2 = jnp.sum(x * x, axis=1, keepdims=True)             # (TN, 1)

    # ||x_i - w_j||^2 via the Gram identity; clamp tiny negative cancellation.
    d2 = jnp.maximum(x2 + w2 - 2.0 * xw, 0.0)              # (TN, K)

    base = 1.0 + d2 * (1.0 / alpha)
    exponent = (alpha + 1.0) / 2.0
    two_e = 2.0 * exponent

    if abs(exponent - 1.0) < 1e-12:
        # alpha == 1: kernel is exactly 1/base (no pow, no log/exp).
        q = 1.0 / base
    elif abs(two_e - round(two_e)) < 1e-12:
        # Half-integer exponent (alpha = 2 -> 1.5, alpha = 3 -> 2, ...):
        # divide / sqrt + VPU integer powers instead of pow's log+exp pair.
        n_half = int(round(two_e))
        inv = 1.0 / base
        m_int = n_half // 2
        q = inv ** m_int if m_int >= 1 else jnp.ones_like(base)
        if n_half % 2 == 1:
            q = q * jnp.sqrt(inv)
    else:
        q = base ** (-exponent)

    denom = jnp.sum(q, axis=1, keepdims=True)              # (TN, 1)
    # Exact divide (not approx reciprocal) so the 1e-5 reference check holds.
    o_ref[...] = (q / denom).astype(o_ref.dtype)


def clustering_layer(x, weight, alpha=1.0, *, max_tile_n=2048,
                     use_bf16_matmul=False,
                     vmem_budget_bytes=12 * 1024 * 1024):
    """DCEC Clustering_Layer forward.  x: (N, D), weight: (K, D) -> (N, K) f32."""
    n, d = x.shape
    k, d_w = weight.shape
    assert d == d_w, "feature dims must match"

    x = x.astype(jnp.float32)
    w = weight.astype(jnp.float32)
    w2 = jnp.sum(w * w, axis=1)[None, :]                   # (1, K) f32

    # ---- VMEM-budget-aware batch tile (fits v5e/v6e/v7x scoped defaults) ----
    bytes_per_row = 2 * 4 * (d + k)          # double-buffered x tile + out tile
    resident = 2 * 4 * (k * d + k)           # weight + ||w||^2 residency
    fit = max(8, (vmem_budget_bytes - resident) // max(bytes_per_row, 1))
    tn = min(max_tile_n, fit, n)
    if n >= 32:
        # Keep >= ~4 grid steps so both v7x TensorCores get tiles.
        tn = min(tn, _round_up(-(-n // 4), 8))
    if tn < n:
        tn = max(8, (tn // 8) * 8)           # sublane-aligned when not full-dim
    grid_n = pl.cdiv(n, tn)

    kernel = functools.partial(
        _clustering_kernel, alpha=float(alpha), use_bf16_matmul=use_bf16_matmul)

    return pl.pallas_call(
        kernel,
        out_shape=jax.ShapeDtypeStruct((n, k), jnp.float32),
        grid=(grid_n,),
        in_specs=[
            pl.BlockSpec((tn, d), lambda i: (i, 0)),       # x batch tile, unpadded
            pl.BlockSpec((k, d), lambda i: (0, 0)),        # resident weight
            pl.BlockSpec((1, k), lambda i: (0, 0)),        # resident ||w||^2
        ],
        out_specs=pl.BlockSpec((tn, k), lambda i: (i, 0)), # unpadded (N, K) output
        compiler_params=pltpu.CompilerParams(
            dimension_semantics=("parallel",),             # independent batch tiles
        ),
    )(x, w, w2)


def xavier_uniform(key, shape):
    # nn.init.xavier_uniform_ on a (out_features, in_features) tensor.
    out_features, in_features = shape
    bound = (6.0 / (in_features + out_features)) ** 0.5
    return jax.random.uniform(
        key, shape, dtype=jnp.float32, minval=-bound, maxval=bound)


def reference_clustering(x, weight, alpha=1.0):
    # Pure-JAX reference mirroring the PyTorch module line by line.
    d = x[:, None, :] - weight[None, :, :]
    d = d * d
    d = jnp.sum(d, axis=2)
    d = 1.0 + d / alpha
    d = 1.0 / d
    d = d ** ((alpha + 1.0) / 2.0)
    d = d.T / jnp.sum(d, axis=1)
    return d.T


if __name__ == "__main__":
    in_features = 10
    out_features = 10
    batch = 8

    key = jax.random.PRNGKey(0)
    kx, kw, kx2 = jax.random.split(key, 3)

    x = jax.random.normal(kx, (batch, in_features), dtype=jnp.float32)
    weight = xavier_uniform(kw, (out_features, in_features))

    # alpha = 1 (reciprocal fast path), half-integer exponents (2, 3), and a
    # general irrational-exponent fallback (1.6).
    for a in (1.0, 2.0, 3.0, 1.6):
        out = jax.block_until_ready(clustering_layer(x, weight, alpha=a))
        ref = reference_clustering(x, weight, alpha=a)
        assert out.shape == (batch, out_features)
        assert jnp.allclose(out, ref, atol=1e-5, rtol=1e-5), f"alpha={a} mismatch"
        assert jnp.allclose(jnp.sum(out, axis=1), 1.0, atol=1e-5)

    # Non-divisible batch exercising the cdiv grid / partial-last-tile path
    # (garbage padding rows are computed but never written back).
    xb = jax.random.normal(kx2, (37, in_features), dtype=jnp.float32)
    outb = jax.block_until_ready(
        clustering_layer(xb, weight, alpha=1.0, max_tile_n=16))
    refb = reference_clustering(xb, weight, alpha=1.0)
    assert outb.shape == (37, out_features)
    assert jnp.allclose(outb, refb, atol=1e-5, rtol=1e-5), "partial-tile mismatch"

    print("KERNEL_OK")
</pallas_src>

<mosaic_0001>
module attributes {stable_mosaic.version = 11 : i64} {
  func.func @_clustering_kernel(%arg0: i32, %arg1: memref<8x10xf32, #tpu.memory_space<vmem>>, %arg2: memref<10x10xf32, #tpu.memory_space<vmem>>, %arg3: memref<1x10xf32, #tpu.memory_space<vmem>>, %arg4: memref<8x10xf32, #tpu.memory_space<vmem>>) attributes {dimension_semantics = [#tpu.dimension_semantics<parallel>], iteration_bounds = array<i64: 1>, scalar_prefetch = 0 : i64, scratch_operands = 0 : i64, tpu.core_type = #tpu.core_type<tc>, window_params = [{transform_indices = @transform_0, window_bounds = array<i64: 8, 10>}, {pipeline_mode = #tpu.pipeline_mode<synchronous>, transform_indices = @transform_1, window_bounds = array<i64: 10, 10>}, {pipeline_mode = #tpu.pipeline_mode<synchronous>, transform_indices = @transform_2, window_bounds = array<i64: 1, 10>}, {transform_indices = @transform_3, window_bounds = array<i64: 8, 10>}]} {
    %c0 = arith.constant 0 : index
    %c0_0 = arith.constant 0 : index
    %0 = vector.load %arg1[%c0, %c0_0] : memref<8x10xf32, #tpu.memory_space<vmem>>, vector<8x10xf32>
    %c0_1 = arith.constant 0 : index
    %c0_2 = arith.constant 0 : index
    %1 = vector.load %arg2[%c0_1, %c0_2] : memref<10x10xf32, #tpu.memory_space<vmem>>, vector<10x10xf32>
    %c0_3 = arith.constant 0 : index
    %c0_4 = arith.constant 0 : index
    %2 = vector.load %arg3[%c0_3, %c0_4] : memref<1x10xf32, #tpu.memory_space<vmem>>, vector<1x10xf32>
    %cst = arith.constant dense<0.000000e+00> : vector<8x10xf32>
    %3 = tpu.matmul %0, %1, %cst {dimension_numbers = #tpu.dot_dimension_numbers<[1], [1], [0], [0], [0, 0, 1, 0], [], []>} : vector<8x10xf32>, vector<10x10xf32>, vector<8x10xf32> -> vector<8x10xf32>
    %4 = arith.mulf %0, %0 : vector<8x10xf32>
    %cst_5 = arith.constant dense<0.000000e+00> : vector<8xf32>
    %5 = vector.multi_reduction <add>, %4, %cst_5 [1] : vector<8x10xf32> to vector<8xf32>
    %6 = vector.shape_cast %5 : vector<8xf32> to vector<8x1xf32>
    %7 = vector.broadcast %6 : vector<8x1xf32> to vector<8x10xf32>
    %8 = vector.broadcast %2 : vector<1x10xf32> to vector<8x10xf32>
    %9 = arith.addf %7, %8 : vector<8x10xf32>
    %cst_6 = arith.constant 2.000000e+00 : f32
    %10 = vector.broadcast %cst_6 : f32 to vector<8x10xf32>
    %11 = arith.mulf %10, %3 : vector<8x10xf32>
    %12 = arith.subf %9, %11 : vector<8x10xf32>
    %cst_7 = arith.constant 0.000000e+00 : f32
    %13 = vector.broadcast %cst_7 : f32 to vector<8x10xf32>
    %14 = arith.maximumf %12, %13 : vector<8x10xf32>
    %cst_8 = arith.constant 1.000000e+00 : f32
    %15 = vector.broadcast %cst_8 : f32 to vector<8x10xf32>
    %16 = arith.mulf %14, %15 : vector<8x10xf32>
    %cst_9 = arith.constant 1.000000e+00 : f32
    %17 = vector.broadcast %cst_9 : f32 to vector<8x10xf32>
    %18 = arith.addf %17, %16 : vector<8x10xf32>
    %cst_10 = arith.constant 1.000000e+00 : f32
    %19 = vector.broadcast %cst_10 : f32 to vector<8x10xf32>
    %20 = arith.divf %19, %18 : vector<8x10xf32>
    %cst_11 = arith.constant dense<0.000000e+00> : vector<8xf32>
    %21 = vector.multi_reduction <add>, %20, %cst_11 [1] : vector<8x10xf32> to vector<8xf32>
    %22 = vector.shape_cast %21 : vector<8xf32> to vector<8x1xf32>
    %23 = vector.broadcast %22 : vector<8x1xf32> to vector<8x10xf32>
    %24 = arith.divf %20, %23 : vector<8x10xf32>
    %c0_12 = arith.constant 0 : index
    %c0_13 = arith.constant 0 : index
    %25 = vector.load %arg4[%c0_12, %c0_13] : memref<8x10xf32, #tpu.memory_space<vmem>>, vector<8x10xf32>
    tpu.vector_store %arg4[%c0_12, %c0_13], %24 {strides = array<i32>} : memref<8x10xf32, #tpu.memory_space<vmem>>, vector<8x10xf32>,
    return
  }
  func.func @transform_0(%arg0: i32) -> (i32, i32) {
    %c0_i32 = arith.constant 0 : i32
    %c0_i32_0 = arith.constant 0 : i32
    return %arg0, %c0_i32 : i32, i32
  }
  func.func @transform_1(%arg0: i32) -> (i32, i32) {
    %c0_i32 = arith.constant 0 : i32
    %c0_i32_0 = arith.constant 0 : i32
    %c0_i32_1 = arith.constant 0 : i32
    return %c0_i32, %c0_i32_0 : i32, i32
  }
  func.func @transform_2(%arg0: i32) -> (i32, i32) {
    %c0_i32 = arith.constant 0 : i32
    %c0_i32_0 = arith.constant 0 : i32
    %c0_i32_1 = arith.constant 0 : i32
    return %c0_i32, %c0_i32_0 : i32, i32
  }
  func.func @transform_3(%arg0: i32) -> (i32, i32) {
    %c0_i32 = arith.constant 0 : i32
    %c0_i32_0 = arith.constant 0 : i32
    return %arg0, %c0_i32 : i32, i32
  }
}

</mosaic_0001>

<llo_original>
// kernel: tpu_custom_call.1
$region0: #{tpu_custom_call.1}
  #allocation0 [shape = 'u32[]', space=smem, size = 0x4, offset = 0x4, fixed_abs, tag = 'smem constant byte address 0x4 - core index']
  #allocation1 [shape = 'u32[144,128]{1,0:T(1,128)}', space=vmem, size = 0x12000, scoped, tag = 'internal scratch']
  %s0 = inlined_call_operand.hbm [shape: f32[8,10], index: 0, kind: input, shape index: {}]
  %s1 = inlined_call_operand.hbm [shape: f32[10,10], index: 1, kind: input, shape index: {}]
  %s2 = inlined_call_operand.vmem [shape: f32[1,10], index: 2, kind: input, shape index: {}]
  %s3 = inlined_call_operand.hbm [shape: f32[8,10], index: 3, kind: output, shape index: {}]
  %s4 = sld [smem:[#allocation0]]
  $region30: #{tpu_custom_call.1} parent=0
    _
  %s6 = ssub.s32 1, %s4
  %s7 = scalar_select 0, %s6, %s4
  $region1: #{tpu_custom_call.1} parent=0
    #allocation2 [shape = 'u8[4096]{0}', space=vmem, size = 0x1000, scoped, tag = 'input window, operand 0, single buffered']
    #allocation3 [shape = 's32[1]{0}', space=sflag, size = 0x4, scoped, tag = 'scoped memory for tpu_custom_call.1']
    #allocation4 [shape = 's32[1]{0}', space=sflag, size = 0x4, scoped, tag = 'scoped memory for tpu_custom_call.1']
    #allocation5 [shape = 'u8[8192]{0}', space=vmem, size = 0x2000, scoped, tag = 'input window, operand 1, single buffered']
    #allocation6 [shape = 's32[1]{0}', space=sflag, size = 0x4, scoped, tag = 'scoped memory for tpu_custom_call.1']
    #allocation7 [shape = 'u8[4096]{0}', space=vmem, size = 0x1000, scoped, tag = 'output window, operand 0, single buffered']
    %8 = vsyncpa [#allocation3], 0
    %9 = vsyncpa [#allocation6], 0
    %10 = vsyncpa [#allocation4], 0
    // Predicated region
    $region2: #{tpu_custom_call.1} parent=1 // pred_check
      _
    $region3: #{tpu_custom_call.1} parent=1 // pred_check_branch
      %12 = sbr.rel (0) target = $region5
    $region4: #{tpu_custom_call.1} parent=1 // pred_region
      %s14 = ssub.s32 128, 128
      %15 = vsyncadd [#allocation3], %s14
      %s17 = sshll.u32 [#allocation2], 4
      %s18 = int_to_ptr.vmem [resolvable:$true] %s17
      %20 = dma.hbm_to_vmem [thread:$0]  %s0, 128, %s18, [#allocation3]
    $region5: #{tpu_custom_call.1} parent=1 // pred_fallthru
      _
    // Predicated region
    $region6: #{tpu_custom_call.1} parent=1 // pred_check
      _
    $region7: #{tpu_custom_call.1} parent=1 // pred_check_branch
      %22 = sbr.rel (0) target = $region9
    $region8: #{tpu_custom_call.1} parent=1 // pred_region
      %s24 = ssub.s32 256, 256
      %25 = vsyncadd [#allocation6], %s24
      %s26 = sshll.u32 [#allocation5], 4
      %s27 = int_to_ptr.vmem [resolvable:$true] %s26
      %32 = dma.hbm_to_vmem [thread:$0]  %s1, 256, %s27, [#allocation6], 128, 128, 8
    $region9: #{tpu_custom_call.1} parent=1 // pred_fallthru
      _
    // Predicated region
    $region10: #{tpu_custom_call.1} parent=1 // pred_check
      _
    $region11: #{tpu_custom_call.1} parent=1 // pred_check_branch
      %34 = sbr.rel (0) target = $region13
    $region12: #{tpu_custom_call.1} parent=1 // pred_region
      _
    $region13: #{tpu_custom_call.1} parent=1 // pred_fallthru
      _
    // Predicated region
    $region14: #{tpu_custom_call.1} parent=1 // pred_check
      _
    $region15: #{tpu_custom_call.1} parent=1 // pred_check_branch
      %36 = sbr.rel (0) target = $region17
    $region16: #{tpu_custom_call.1} parent=1 // pred_region
      %37 = dma.done [#allocation3], 128
    $region17: #{tpu_custom_call.1} parent=1 // pred_fallthru
      _
    // Predicated region
    $region18: #{tpu_custom_call.1} parent=1 // pred_check
      _
    $region19: #{tpu_custom_call.1} parent=1 // pred_check_branch
      %39 = sbr.rel (0) target = $region21
    $region20: #{tpu_custom_call.1} parent=1 // pred_region
      %40 = dma.done [#allocation6], 256
    $region21: #{tpu_custom_call.1} parent=1 // pred_fallthru
      _
    %v41 = vld [vmem:[#allocation2] sm:$0xff]
    %v42 = vld [vmem:[#allocation5] sm:$0xff]
    %v43 = vld [vmem:[#allocation5 + $0x8] sm:$0x3]
    %v44 = vld [vmem:[%s2] sm:$0x1]
    %vm45 = vcmask 80896
    %v47 = vsel %vm45, %v41, 0
    %v50 = vsel %vm45, %v42, 0
    %v53 = vsel %vm45, %v43, 0
    %55 = vmatprep.subr.mxu0 0.0
    %56 = vmatpush1.xpose.msra.mxu0 0.0
    %57 = vmatprep.subr.mxu0 0.0
    %58 = vmatpush1.xpose.msra.mxu0 0.0
    %59 = vmatprep.subr.mxu0 0.0
    %60 = vmatpush1.xpose.msra.mxu0 0.0
    %61 = vmatprep.subr.mxu0 0.0
    %62 = vmatpush1.xpose.msra.mxu0 0.0
    %63 = vmatprep.subr.mxu0 0.0
    %64 = vmatpush1.xpose.msra.mxu0 0.0
    %65 = vmatprep.subr.mxu0 0.0
    %66 = vmatpush1.xpose.msra.mxu0 0.0
    %67 = vmatprep.subr.mxu0 0.0
    %68 = vmatpush1.xpose.msra.mxu0 0.0
    %69 = vmatprep.subr.mxu0 0.0
    %70 = vmatpush1.xpose.msra.mxu0 0.0
    %71 = vmatprep.subr.mxu0 0.0
    %72 = vmatpush1.xpose.msra.mxu0 0.0
    %73 = vmatprep.subr.mxu0 0.0
    %74 = vmatpush1.xpose.msra.mxu0 0.0
    %75 = vmatprep.subr.mxu0 0.0
    %76 = vmatpush1.xpose.msra.mxu0 0.0
    %77 = vmatprep.subr.mxu0 0.0
    %78 = vmatpush1.xpose.msra.mxu0 0.0
    %79 = vmatprep.subr.mxu0 0.0
    %80 = vmatpush1.xpose.msra.mxu0 0.0
    %81 = vmatprep.subr.mxu0 0.0
    %82 = vmatpush1.xpose.msra.mxu0 0.0
    %83 = vmatprep.subr.mxu0 0.0
    %84 = vmatpush1.xpose.msra.mxu0 %v53
    %85 = vmatprep.subr.mxu0 0.0
    %86 = vmatpush1.xpose.msra.mxu0 %v50
    %87 = vmatprep.subr.mxu0 0.0
    %88 = vmatpush2.xpose.msra.mxu0 0.0
    %89 = vmatprep.subr.mxu0 0.0
    %90 = vmatpush2.xpose.msra.mxu0 0.0
    %91 = vmatprep.subr.mxu0 0.0
    %92 = vmatpush2.xpose.msra.mxu0 0.0
    %93 = vmatprep.subr.mxu0 0.0
    %94 = vmatpush2.xpose.msra.mxu0 0.0
    %95 = vmatprep.subr.mxu0 0.0
    %96 = vmatpush2.xpose.msra.mxu0 0.0
    %97 = vmatprep.subr.mxu0 0.0
    %98 = vmatpush2.xpose.msra.mxu0 0.0
    %99 = vmatprep.subr.mxu0 0.0
    %100 = vmatpush2.xpose.msra.mxu0 0.0
    %101 = vmatprep.subr.mxu0 0.0
    %102 = vmatpush2.xpose.msra.mxu0 0.0
    %103 = vmatprep.subr.mxu0 0.0
    %104 = vmatpush2.xpose.msra.mxu0 0.0
    %105 = vmatprep.subr.mxu0 0.0
    %106 = vmatpush2.xpose.msra.mxu0 0.0
    %107 = vmatprep.subr.mxu0 0.0
    %108 = vmatpush2.xpose.msra.mxu0 0.0
    %109 = vmatprep.subr.mxu0 0.0
    %110 = vmatpush2.xpose.msra.mxu0 0.0
    %111 = vmatprep.subr.mxu0 0.0
    %112 = vmatpush2.xpose.msra.mxu0 0.0
    %113 = vmatprep.subr.mxu0 0.0
    %114 = vmatpush2.xpose.msra.mxu0 0.0
    %115 = vmatprep.subr.mxu0 0.0
    %116 = vmatpush2.xpose.msra.mxu0 0.0
    %117 = vmatprep.subr.mxu0 0.0
    %118 = vmatpush2.xpose.msra.mxu0 0.0
    %119 = vmatprep.mubr.f32.mxu0 0.0
    %120 = vmatmul.mubr.f32.gmra.mxu0 %v47
    %v121 = vpop.f32.mrf.mxu0
    %v122 = vadd.f32 0.0, %v121
    %v123 = vpop.f32.mrf.mxu0
    %124 = vdwg.mxu0
    %v125 = vmul.f32 %v41, %v41
    %v126 = vsel %vm45, %v125, 0.0
    %127 = vadd.xlane.f32.xlu0 %v126
    %v128 = vpop.xlane.xlu0 %127
    %v130 = vlaneseq
    %v131 = vshrl.u32 %v130, 7
    %v132 = vsub.s32 0, %v131
    %v133 = vrot.slane %v44, %v132
    %v135 = vadd.f32 %v128, %v133
    %v136 = vmul.f32 %v122, 2.0
    %v137 = vsub.f32 %v135, %v136
    %v138 = vmax.f32 %v137, 0.0
    %v139 = vadd.f32 %v138, 1.0
    %v140 = vrcp.pop %v139
    %v141 = vmul.f32 1.0, %v140
    %v142 = vsel %vm45, %v141, 0.0
    %143 = vadd.xlane.f32.xlu0 %v142
    %v144 = vpop.xlane.xlu0 %143
    %v145 = vrcp.pop %v144
    %v146 = vmul.f32 %v141, %v145
    %147 = vst.msk [vmem:[#allocation7] sm:$0xff] %vm45, %v146
    // Predicated region
    $region22: #{tpu_custom_call.1} parent=1 // pred_check
      _
    $region23: #{tpu_custom_call.1} parent=1 // pred_check_branch
      %149 = sbr.rel (0) target = $region25
    $region24: #{tpu_custom_call.1} parent=1 // pred_region
      %s151 = ssub.s32 128, 128
      %152 = vsyncadd [#allocation4], %s151
      %s154 = sshll.u32 [#allocation7], 4
      %s155 = int_to_ptr.vmem [resolvable:$true] %s154
      %157 = dma.vmem_to_hbm [thread:$0]  %s155, 128, %s3, [#allocation4]
    $region25: #{tpu_custom_call.1} parent=1 // pred_fallthru
      _
    // Predicated region
    $region26: #{tpu_custom_call.1} parent=1 // pred_check
      _
    $region27: #{tpu_custom_call.1} parent=1 // pred_check_branch
      %159 = sbr.rel (0) target = $region29
    $region28: #{tpu_custom_call.1} parent=1 // pred_region
      %160 = dma.done [#allocation4], 128
    $region29: #{tpu_custom_call.1} parent=1 // pred_fallthru
      _
    %161 = vsyncpa [#allocation3], 1
    %162 = vsyncpa [#allocation6], 1
    %163 = vsyncpa [#allocation4], 1

</llo_original>
